<compile_context>
chip_gen: v7x
topology: tpu7x:2x2x1
jax: 0.10.0
libtpu: 0.0.40
codegen_flags: <defaults>
</compile_context>

<pallas_src>
import functools

import jax
import jax.numpy as jnp
from jax.experimental import pallas as pl
from jax.experimental.pallas import tpu as pltpu


# --------------------------------------------------------------------------- #
# Stage 1: meta_net MLP + padded ctx shift (single VMEM-resident block, runs once)
# --------------------------------------------------------------------------- #
def meta_net_kernel(im_ref, w1_ref, b1_ref, w2_ref, b2_ref, ctx_ref, out_ref,
                    *, pre_len, n_ctx):
    # bias = Linear2(ReLU(Linear1(im_features)))  -- kept in f32 throughout so the
    # result matches an fp32 torch meta_net even if the weights arrive in bf16.
    x = im_ref[...].astype(jnp.float32)
    h = jnp.dot(x, w1_ref[...].astype(jnp.float32),
                preferred_element_type=jnp.float32)
    h = jnp.maximum(h + b1_ref[...].astype(jnp.float32), 0.0)          # (B, hid)
    bias = jnp.dot(h, w2_ref[...].astype(jnp.float32),
                   preferred_element_type=jnp.float32)
    bias = bias + b2_ref[...].astype(jnp.float32)                      # (B, D)

    # ctx_shifted = ctx[None] + bias[:, None]  -> (B, n_ctx, D)
    shifted = ctx_ref[...].astype(jnp.float32)[None, :, :] + bias[:, None, :]

    # Write the zero-padded version: zeros in the prefix/suffix slots so stage 2
    # can do `template + ctx_padded` with one aligned full store per tile.
    out_ref[...] = jnp.zeros_like(out_ref)
    out_ref[:, pre_len:pre_len + n_ctx, :] = shifted.astype(out_ref.dtype)


# --------------------------------------------------------------------------- #
# Stage 2: prompt assembly.  One grid step = one (class-tile, batch) output
# block; a single full aligned store (template + broadcast ctx row).
# --------------------------------------------------------------------------- #
def assemble_kernel(ctx_pad_ref, template_ref, out_ref):
    # ctx_pad_ref : (B, seq, D)        -- full array, VMEM-resident across the grid
    # template_ref: (cls_tile, seq, D) -- frozen prefix/zeros/suffix, resident over batch
    # out_ref     : (cls_tile, seq, D) -- batch dim squeezed via BlockSpec(None, ...)
    b = pl.program_id(1)                                   # batch = inner grid axis
    ctx_row = ctx_pad_ref[pl.ds(b, 1), :, :].astype(jnp.float32)     # (1, seq, D)
    out_ref[...] = (template_ref[...].astype(jnp.float32) + ctx_row).astype(out_ref.dtype)


# --------------------------------------------------------------------------- #
# Frozen-buffer template: concat(prefix, zeros(n_ctx), suffix).  The buffers never
# change, so build this ONCE and reuse it across forward calls.
# --------------------------------------------------------------------------- #
def make_prompt_template(token_prefix, token_suffix, n_ctx):
    n_cls, _, ctx_dim = token_prefix.shape
    zeros = jnp.zeros((n_cls, n_ctx, ctx_dim), dtype=token_prefix.dtype)
    return jnp.concatenate([token_prefix, zeros, token_suffix], axis=1)


# --------------------------------------------------------------------------- #
# Wrapper
# --------------------------------------------------------------------------- #
def prompt_learner_forward(im_features, w1, b1, w2, b2, ctx,
                           token_prefix, token_suffix,
                           *, template=None, out_dtype=None,
                           cls_tile_override=None,
                           allow_lane_misaligned=False):
    B, vis_dim = im_features.shape
    hid = w1.shape[1]
    n_ctx, ctx_dim = ctx.shape
    n_cls, pre_len, _ = token_prefix.shape
    suf_len = token_suffix.shape[1]
    seq_len = pre_len + n_ctx + suf_len

    if out_dtype is None:
        # RECOMMENDED: out_dtype=jnp.bfloat16 when the text encoder runs in bf16.
        # Stage 2 is HBM-write-bound; the in-kernel cast halves the dominant traffic.
        out_dtype = im_features.dtype

    if ctx_dim % 128 != 0 and not allow_lane_misaligned:
        raise ValueError(
            f"ctx_dim={ctx_dim} is not a multiple of 128: output stores fall off the "
            "lane-dense path (masked vst, ~4.5x slower store stream). Pad the embedding "
            "dim to a multiple of 128 or pass allow_lane_misaligned=True.")

    if template is None:
        # Built here only as a fallback; callers should precompute + cache it since
        # token_prefix / token_suffix are frozen buffers.
        template = make_prompt_template(token_prefix, token_suffix, n_ctx)
    assert template.shape == (n_cls, seq_len, ctx_dim), template.shape

    # ---- stage 1: tiny MLP, hoisted out of the replication loop (runs once) ----
    ctx_padded = pl.pallas_call(
        functools.partial(meta_net_kernel, pre_len=pre_len, n_ctx=n_ctx),
        out_shape=jax.ShapeDtypeStruct((B, seq_len, ctx_dim), jnp.float32),
    )(im_features, w1, b1.reshape(1, hid), w2, b2.reshape(1, ctx_dim), ctx)

    # ---- stage 2: size the class tile from the true double-buffered working set ----
    in_bytes = jnp.dtype(template.dtype).itemsize
    out_bytes = jnp.dtype(out_dtype).itemsize
    try:
        vmem_cap = int(pltpu.get_tpu_info().vmem_capacity_bytes)
    except Exception:
        vmem_cap = 64 * 1024 * 1024                # conservative: v7x per-TC VMEM
    # v5e/v6e (128 MiB) -> 64 MiB limit; v7x (64 MiB) -> 48 MiB limit.
    vmem_limit = max(32 * 1024 * 1024, min(64 * 1024 * 1024, (vmem_cap * 3) // 4))
    headroom = 8 * 1024 * 1024                     # compiler internal scratch, sems
    ctx_pad_bytes = 2 * B * seq_len * ctx_dim * 4  # resident f32 slab (count dbl-buffered)
    per_cls_bytes = 2 * seq_len * ctx_dim * (in_bytes + out_bytes)  # template + out, x2 bufs
    budget = max(vmem_limit - headroom - ctx_pad_bytes, per_cls_bytes)
    cls_tile = int(max(1, min(n_cls, budget // per_cls_bytes)))
    if cls_tile_override is not None:
        cls_tile = int(max(1, min(n_cls, cls_tile_override)))
    num_tiles = pl.cdiv(n_cls, cls_tile)
    cls_tile = pl.cdiv(n_cls, num_tiles)           # balance tiles; a partial final tile is
                                                   # handled by Pallas masked writeback.
    grid = (num_tiles, B)                          # batch INNER -> template stays resident

    # TODO(synk): if the consumer can read prefix/suffix directly, emit only
    # ctx_shifted and skip replicating the frozen embeddings B*n_cls times
    # (cuts HBM writes ~seq/n_ctx = 5-20x, dwarfing every in-kernel optimization);
    # kept here to preserve the module's output contract.
    prompts = pl.pallas_call(
        assemble_kernel,
        out_shape=jax.ShapeDtypeStruct((B, n_cls, seq_len, ctx_dim), out_dtype),
        grid=grid,
        in_specs=[
            # ctx_padded: tiny, fully VMEM-resident (constant block index)
            pl.BlockSpec((B, seq_len, ctx_dim), lambda c, b: (0, 0, 0)),
            # template: blocked along the class axis only; index depends only on the
            # OUTER grid axis, so it is not re-DMA'd across the inner batch axis.
            pl.BlockSpec((cls_tile, seq_len, ctx_dim), lambda c, b: (c, 0, 0)),
        ],
        out_specs=pl.BlockSpec((None, cls_tile, seq_len, ctx_dim),
                               lambda c, b: (b, c, 0, 0)),
        compiler_params=pltpu.CompilerParams(
            dimension_semantics=("parallel", "arbitrary"),
            vmem_limit_bytes=vmem_limit),
    )(ctx_padded, template)

    return prompts


# --------------------------------------------------------------------------- #
# Pure-JAX reference of the PyTorch forward
# --------------------------------------------------------------------------- #
def reference_forward(im_features, w1, b1, w2, b2, ctx, token_prefix, token_suffix):
    h = jnp.maximum(im_features @ w1 + b1, 0.0)
    bias = h @ w2 + b2                                                  # (B, ctx_dim)
    ctx_shifted = ctx[None, :, :] + bias[:, None, :]                    # (B, n_ctx, D)
    B = im_features.shape[0]
    n_cls = token_prefix.shape[0]
    prompts = []
    for i in range(B):
        ctx_i = jnp.broadcast_to(ctx_shifted[i][None], (n_cls,) + ctx_shifted[i].shape)
        prompts.append(jnp.concatenate([token_prefix, ctx_i, token_suffix], axis=1))
    return jnp.stack(prompts, axis=0)


if __name__ == "__main__":
    # Small synthetic config consistent with the module (CLIP-style 77-token prompt,
    # lane-aligned ctx_dim).
    B = 2            # batch
    vis_dim = 64     # clip_model.visual.output_dim
    hid = vis_dim // 16
    ctx_dim = 128    # clip_model.ln_final.weight.shape[0]  (real CLIP: 512)
    n_ctx = 4
    n_cls = 10
    suf_len = 77 - 1 - n_ctx   # full 77-token prompt: [SOS] + ctx + suffix

    key = jax.random.PRNGKey(0)
    k = jax.random.split(key, 8)

    im_features = jax.random.normal(k[0], (B, vis_dim), dtype=jnp.float32)
    w1 = jax.random.normal(k[1], (vis_dim, hid), dtype=jnp.float32) * 0.1
    b1 = jax.random.normal(k[2], (hid,), dtype=jnp.float32) * 0.1
    w2 = jax.random.normal(k[3], (hid, ctx_dim), dtype=jnp.float32) * 0.1
    b2 = jax.random.normal(k[4], (ctx_dim,), dtype=jnp.float32) * 0.1
    ctx = jax.random.normal(k[5], (n_ctx, ctx_dim), dtype=jnp.float32) * 0.02
    token_prefix = jax.random.normal(k[6], (n_cls, 1, ctx_dim), dtype=jnp.float32)
    token_suffix = jax.random.normal(k[7], (n_cls, suf_len, ctx_dim), dtype=jnp.float32)

    # Frozen prefix/suffix -> build the template once and reuse it.
    template = jax.block_until_ready(
        make_prompt_template(token_prefix, token_suffix, n_ctx))

    ref = reference_forward(im_features, w1, b1, w2, b2, ctx,
                            token_prefix, token_suffix)

    # 1) default path (f32 output, auto-sized class tile)
    out = prompt_learner_forward(im_features, w1, b1, w2, b2, ctx,
                                 token_prefix, token_suffix, template=template)
    out = jax.block_until_ready(out)
    assert out.shape == (B, n_cls, 1 + n_ctx + suf_len, ctx_dim), out.shape
    assert jnp.allclose(out, ref, atol=1e-5, rtol=1e-5), "f32 mismatch vs reference"

    # 2) forced small class tile -> partial final tile (n_cls % cls_tile != 0);
    #    verifies masked writeback of the out-of-range block portion.
    out_partial = prompt_learner_forward(im_features, w1, b1, w2, b2, ctx,
                                         token_prefix, token_suffix,
                                         template=template, cls_tile_override=4)
    out_partial = jax.block_until_ready(out_partial)
    assert jnp.allclose(out_partial, ref, atol=1e-5, rtol=1e-5), "partial-tile mismatch"

    # 3) recommended bf16 output (halves the dominant HBM write traffic)
    out_bf16 = prompt_learner_forward(im_features, w1, b1, w2, b2, ctx,
                                      token_prefix, token_suffix,
                                      template=template, out_dtype=jnp.bfloat16)
    out_bf16 = jax.block_until_ready(out_bf16)
    assert jnp.allclose(out_bf16.astype(jnp.float32), ref, atol=5e-2, rtol=5e-2), \
        "bf16 mismatch vs reference"

    print("KERNEL_OK")
</pallas_src>

<mosaic_0001>
module attributes {stable_mosaic.version = 11 : i64} {
  func.func @meta_net_kernel(%arg0: memref<2x64xf32, #tpu.memory_space<vmem>>, %arg1: memref<64x4xf32, #tpu.memory_space<vmem>>, %arg2: memref<1x4xf32, #tpu.memory_space<vmem>>, %arg3: memref<4x128xf32, #tpu.memory_space<vmem>>, %arg4: memref<1x128xf32, #tpu.memory_space<vmem>>, %arg5: memref<4x128xf32, #tpu.memory_space<vmem>>, %arg6: memref<2x77x128xf32, #tpu.memory_space<vmem>>) attributes {dimension_semantics = [], scalar_prefetch = 0 : i64, scratch_operands = 0 : i64, tpu.core_type = #tpu.core_type<tc>} {
    %c0 = arith.constant 0 : index
    %c0_0 = arith.constant 0 : index
    %0 = vector.load %arg0[%c0, %c0_0] : memref<2x64xf32, #tpu.memory_space<vmem>>, vector<2x64xf32>
    %c0_1 = arith.constant 0 : index
    %c0_2 = arith.constant 0 : index
    %1 = vector.load %arg1[%c0_1, %c0_2] : memref<64x4xf32, #tpu.memory_space<vmem>>, vector<64x4xf32>
    %cst = arith.constant dense<0.000000e+00> : vector<2x4xf32>
    %2 = tpu.matmul %0, %1, %cst {dimension_numbers = #tpu.dot_dimension_numbers<[1], [0], [0], [1], [0, 0, 1, 1], [], []>} : vector<2x64xf32>, vector<64x4xf32>, vector<2x4xf32> -> vector<2x4xf32>
    %c0_3 = arith.constant 0 : index
    %c0_4 = arith.constant 0 : index
    %3 = vector.load %arg2[%c0_3, %c0_4] : memref<1x4xf32, #tpu.memory_space<vmem>>, vector<1x4xf32>
    %4 = vector.broadcast %3 : vector<1x4xf32> to vector<2x4xf32>
    %5 = arith.addf %2, %4 : vector<2x4xf32>
    %cst_5 = arith.constant 0.000000e+00 : f32
    %6 = vector.broadcast %cst_5 : f32 to vector<2x4xf32>
    %7 = arith.maximumf %5, %6 : vector<2x4xf32>
    %c0_6 = arith.constant 0 : index
    %c0_7 = arith.constant 0 : index
    %8 = vector.load %arg3[%c0_6, %c0_7] : memref<4x128xf32, #tpu.memory_space<vmem>>, vector<4x128xf32>
    %cst_8 = arith.constant dense<0.000000e+00> : vector<2x128xf32>
    %9 = tpu.matmul %7, %8, %cst_8 {dimension_numbers = #tpu.dot_dimension_numbers<[1], [0], [0], [1], [0, 0, 1, 1], [], []>} : vector<2x4xf32>, vector<4x128xf32>, vector<2x128xf32> -> vector<2x128xf32>
    %c0_9 = arith.constant 0 : index
    %c0_10 = arith.constant 0 : index
    %10 = vector.load %arg4[%c0_9, %c0_10] : memref<1x128xf32, #tpu.memory_space<vmem>>, vector<1x128xf32>
    %11 = vector.broadcast %10 : vector<1x128xf32> to vector<2x128xf32>
    %12 = arith.addf %9, %11 : vector<2x128xf32>
    %c0_11 = arith.constant 0 : index
    %c0_12 = arith.constant 0 : index
    %13 = vector.load %arg5[%c0_11, %c0_12] : memref<4x128xf32, #tpu.memory_space<vmem>>, vector<4x128xf32>
    %14 = vector.shape_cast %13 : vector<4x128xf32> to vector<1x4x128xf32>
    %15 = vector.shape_cast %12 : vector<2x128xf32> to vector<2x1x128xf32>
    %16 = vector.broadcast %14 : vector<1x4x128xf32> to vector<2x4x128xf32>
    %17 = vector.broadcast %15 : vector<2x1x128xf32> to vector<2x4x128xf32>
    %18 = arith.addf %16, %17 : vector<2x4x128xf32>
    %cst_13 = arith.constant 0.000000e+00 : f32
    %19 = vector.broadcast %cst_13 : f32 to vector<2x77x128xf32>
    %c0_14 = arith.constant 0 : index
    %c0_15 = arith.constant 0 : index
    %c0_16 = arith.constant 0 : index
    %20 = vector.load %arg6[%c0_14, %c0_15, %c0_16] : memref<2x77x128xf32, #tpu.memory_space<vmem>>, vector<2x77x128xf32>
    tpu.vector_store %arg6[%c0_14, %c0_15, %c0_16], %19 {strides = array<i32>} : memref<2x77x128xf32, #tpu.memory_space<vmem>>, vector<2x77x128xf32>,
    %c0_17 = arith.constant 0 : index
    %c1 = arith.constant 1 : index
    %c0_18 = arith.constant 0 : index
    %21 = vector.load %arg6[%c0_17, %c1, %c0_18] : memref<2x77x128xf32, #tpu.memory_space<vmem>>, vector<2x4x128xf32>
    tpu.vector_store %arg6[%c0_17, %c1, %c0_18], %18 {strides = array<i32>} : memref<2x77x128xf32, #tpu.memory_space<vmem>>, vector<2x4x128xf32>,
    return
  }
}

</mosaic_0001>

<llo_original>
// kernel: tpu_custom_call.1
$region0: #{tpu_custom_call.1}
  #allocation0 [shape = 'u32[]', space=smem, size = 0x4, offset = 0x4, fixed_abs, tag = 'smem constant byte address 0x4 - core index']
  #allocation1 [shape = 'u32[144,128]{1,0:T(1,128)}', space=vmem, size = 0x12000, scoped, tag = 'internal scratch']
  %s0 = inlined_call_operand.vmem [shape: f32[2,64], index: 0, kind: input, shape index: {}]
  %s1 = inlined_call_operand.vmem [shape: f32[64,4], index: 1, kind: input, shape index: {}]
  %s2 = inlined_call_operand.vmem [shape: f32[1,4], index: 2, kind: input, shape index: {}]
  %s3 = inlined_call_operand.vmem [shape: f32[4,128], index: 3, kind: input, shape index: {}]
  %s4 = inlined_call_operand.vmem [shape: f32[1,128], index: 4, kind: input, shape index: {}]
  %s5 = inlined_call_operand.vmem [shape: f32[4,128], index: 5, kind: input, shape index: {}]
  %s6 = inlined_call_operand.vmem [shape: f32[2,77,128], index: 6, kind: output, shape index: {}]
  %s7 = sld [smem:[#allocation0]]
  $region34: #{tpu_custom_call.1} parent=0
    _
  %s9 = ssub.s32 1, %s7
  %s10 = scalar_select 0, %s9, %s7
  // Predicated region
  $region2: #{tpu_custom_call.1} parent=0 // pred_check
    _
  $region3: #{tpu_custom_call.1} parent=0 // pred_check_branch
    %12 = sbr.rel (0) target = $region5
  $region4: #{tpu_custom_call.1} parent=0 // pred_region
    _
  $region5: #{tpu_custom_call.1} parent=0 // pred_fallthru
    _
  // Predicated region
  $region6: #{tpu_custom_call.1} parent=0 // pred_check
    _
  $region7: #{tpu_custom_call.1} parent=0 // pred_check_branch
    %14 = sbr.rel (0) target = $region9
  $region8: #{tpu_custom_call.1} parent=0 // pred_region
    _
  $region9: #{tpu_custom_call.1} parent=0 // pred_fallthru
    _
  // Predicated region
  $region10: #{tpu_custom_call.1} parent=0 // pred_check
    _
  $region11: #{tpu_custom_call.1} parent=0 // pred_check_branch
    %16 = sbr.rel (0) target = $region13
  $region12: #{tpu_custom_call.1} parent=0 // pred_region
    _
  $region13: #{tpu_custom_call.1} parent=0 // pred_fallthru
    _
  // Predicated region
  $region14: #{tpu_custom_call.1} parent=0 // pred_check
    _
  $region15: #{tpu_custom_call.1} parent=0 // pred_check_branch
    %18 = sbr.rel (0) target = $region17
  $region16: #{tpu_custom_call.1} parent=0 // pred_region
    _
  $region17: #{tpu_custom_call.1} parent=0 // pred_fallthru
    _
  // Predicated region
  $region18: #{tpu_custom_call.1} parent=0 // pred_check
    _
  $region19: #{tpu_custom_call.1} parent=0 // pred_check_branch
    %20 = sbr.rel (0) target = $region21
  $region20: #{tpu_custom_call.1} parent=0 // pred_region
    _
  $region21: #{tpu_custom_call.1} parent=0 // pred_fallthru
    _
  // Predicated region
  $region22: #{tpu_custom_call.1} parent=0 // pred_check
    _
  $region23: #{tpu_custom_call.1} parent=0 // pred_check_branch
    %22 = sbr.rel (0) target = $region25
  $region24: #{tpu_custom_call.1} parent=0 // pred_region
    _
  $region25: #{tpu_custom_call.1} parent=0 // pred_fallthru
    _
  %v23 = vld [vmem:[%s0] sm:$0x3]
  %v24 = vld [vmem:[%s1] sm:$0xff]
  %v25 = vld [vmem:[%s1 + $0x8] sm:$0xff]
  %v26 = vld [vmem:[%s1 + $0x10] sm:$0xff]
  %v27 = vld [vmem:[%s1 + $0x18] sm:$0xff]
  %v28 = vld [vmem:[%s1 + $0x20] sm:$0xff]
  %v29 = vld [vmem:[%s1 + $0x28] sm:$0xff]
  %v30 = vld [vmem:[%s1 + $0x30] sm:$0xff]
  %v31 = vld [vmem:[%s1 + $0x38] sm:$0xff]
  %v32 = vld [vmem:[%s2] sm:$0x1]
  %v34 = vlaneseq
  %v35 = vshrl.u32 %v34, 7
  %v36 = vsub.s32 0, %v35
  %v37 = vrot.slane %v32, %v36
  %vm39 = vcmask 523264
  %v41 = vsel %vm39, %v23, 0
  %43 = vmatprep.subr.mxu0 0.0
  %44 = vmatpush1.msra.mxu0 %v24
  %45 = vmatprep.subr.mxu0 0.0
  %46 = vmatpush1.msra.mxu0 %v25
  %47 = vmatprep.subr.mxu0 0.0
  %48 = vmatpush1.msra.mxu0 %v26
  %49 = vmatprep.subr.mxu0 0.0
  %50 = vmatpush1.msra.mxu0 %v27
  %51 = vmatprep.subr.mxu0 0.0
  %52 = vmatpush1.msra.mxu0 %v28
  %53 = vmatprep.subr.mxu0 0.0
  %54 = vmatpush1.msra.mxu0 %v29
  %55 = vmatprep.subr.mxu0 0.0
  %56 = vmatpush1.msra.mxu0 %v30
  %57 = vmatprep.subr.mxu0 0.0
  %58 = vmatpush1.msra.mxu0 %v31
  %59 = vmatprep.subr.mxu0 0.0
  %60 = vmatpush1.msra.mxu0 0.0
  %61 = vmatprep.subr.mxu0 0.0
  %62 = vmatpush1.msra.mxu0 0.0
  %63 = vmatprep.subr.mxu0 0.0
  %64 = vmatpush1.msra.mxu0 0.0
  %65 = vmatprep.subr.mxu0 0.0
  %66 = vmatpush1.msra.mxu0 0.0
  %67 = vmatprep.subr.mxu0 0.0
  %68 = vmatpush1.msra.mxu0 0.0
  %69 = vmatprep.subr.mxu0 0.0
  %70 = vmatpush1.msra.mxu0 0.0
  %71 = vmatprep.subr.mxu0 0.0
  %72 = vmatpush1.msra.mxu0 0.0
  %73 = vmatprep.subr.mxu0 0.0
  %74 = vmatpush1.msra.mxu0 0.0
  %75 = vmatprep.subr.mxu0 0.0
  %76 = vmatpush1.msra.mxu0 0.0
  %77 = vmatprep.subr.mxu0 0.0
  %78 = vmatpush1.msra.mxu0 0.0
  %79 = vmatprep.subr.mxu0 0.0
  %80 = vmatpush1.msra.mxu0 0.0
  %81 = vmatprep.subr.mxu0 0.0
  %82 = vmatpush1.msra.mxu0 0.0
  %83 = vmatprep.subr.mxu0 0.0
  %84 = vmatpush1.msra.mxu0 0.0
  %85 = vmatprep.subr.mxu0 0.0
  %86 = vmatpush1.msra.mxu0 0.0
  %87 = vmatprep.subr.mxu0 0.0
  %88 = vmatpush1.msra.mxu0 0.0
  %89 = vmatprep.subr.mxu0 0.0
  %90 = vmatpush1.msra.mxu0 0.0
  %91 = vmatprep.subr.mxu0 0.0
  %92 = vmatpush1.msra.mxu0 0.0
  %93 = vmatprep.subr.mxu0 0.0
  %94 = vmatpush1.msra.mxu0 0.0
  %95 = vmatprep.subr.mxu0 0.0
  %96 = vmatpush1.msra.mxu0 0.0
  %97 = vmatprep.subr.mxu0 0.0
  %98 = vmatpush1.msra.mxu0 0.0
  %99 = vmatprep.subr.mxu0 0.0
  %100 = vmatpush1.msra.mxu0 0.0
  %101 = vmatprep.subr.mxu0 0.0
  %102 = vmatpush1.msra.mxu0 0.0
  %103 = vmatprep.subr.mxu0 0.0
  %104 = vmatpush1.msra.mxu0 0.0
  %105 = vmatprep.subr.mxu0 0.0
  %106 = vmatpush1.msra.mxu0 0.0
  %107 = vmatprep.mubr.f32.mxu0 0.0
  %108 = vmatmul.mubr.f32.gmra.mrb[0].mxu0 %v41
  %v109 = vpop.f32.mrb[0].mxu0
  %v110 = vadd.f32 %v37, %v109
  %v111 = vpop.f32.mrb[0].mxu0
  %112 = vdwg.mxu0
  %v113 = vmax.f32 %v110, 0.0
  %v114 = vld [vmem:[%s3] sm:$0xf]
  %v115 = vld [vmem:[%s4] sm:$0x1]
  %v117 = vlaneseq
  %v118 = vshrl.u32 %v117, 7
  %v119 = vsub.s32 0, %v118
  %v120 = vrot.slane %v115, %v119
  %vm122 = vcmask 31744
  %v124 = vsel %vm122, %v113, 0
  %vm126 = vcmask 1043456
  %v128 = vsel %vm126, %v114, 0
  %130 = vmatprep.subr.mxu0 0.0
  %131 = vmatpush1.msra.mxu0 %v128
  %132 = vmatprep.subr.mxu0 0.0
  %133 = vmatpush1.msra.mxu0 0.0
  %134 = vmatprep.subr.mxu0 0.0
  %135 = vmatpush1.msra.mxu0 0.0
  %136 = vmatprep.subr.mxu0 0.0
  %137 = vmatpush1.msra.mxu0 0.0
  %138 = vmatprep.subr.mxu0 0.0
  %139 = vmatpush1.msra.mxu0 0.0
  %140 = vmatprep.subr.mxu0 0.0
  %141 = vmatpush1.msra.mxu0 0.0
  %142 = vmatprep.subr.mxu0 0.0
  %143 = vmatpush1.msra.mxu0 0.0
  %144 = vmatprep.subr.mxu0 0.0
  %145 = vmatpush1.msra.mxu0 0.0
  %146 = vmatprep.subr.mxu0 0.0
  %147 = vmatpush1.msra.mxu0 0.0
  %148 = vmatprep.subr.mxu0 0.0
  %149 = vmatpush1.msra.mxu0 0.0
  %150 = vmatprep.subr.mxu0 0.0
  %151 = vmatpush1.msra.mxu0 0.0
  %152 = vmatprep.subr.mxu0 0.0
  %153 = vmatpush1.msra.mxu0 0.0
  %154 = vmatprep.subr.mxu0 0.0
  %155 = vmatpush1.msra.mxu0 0.0
  %156 = vmatprep.subr.mxu0 0.0
  %157 = vmatpush1.msra.mxu0 0.0
  %158 = vmatprep.subr.mxu0 0.0
  %159 = vmatpush1.msra.mxu0 0.0
  %160 = vmatprep.subr.mxu0 0.0
  %161 = vmatpush1.msra.mxu0 0.0
  %162 = vmatprep.subr.mxu0 0.0
  %163 = vmatpush1.msra.mxu0 0.0
  %164 = vmatprep.subr.mxu0 0.0
  %165 = vmatpush1.msra.mxu0 0.0
  %166 = vmatprep.subr.mxu0 0.0
  %167 = vmatpush1.msra.mxu0 0.0
  %168 = vmatprep.subr.mxu0 0.0
  %169 = vmatpush1.msra.mxu0 0.0
  %170 = vmatprep.subr.mxu0 0.0
  %171 = vmatpush1.msra.mxu0 0.0
  %172 = vmatprep.subr.mxu0 0.0
  %173 = vmatpush1.msra.mxu0 0.0
  %174 = vmatprep.subr.mxu0 0.0
  %175 = vmatpush1.msra.mxu0 0.0
  %176 = vmatprep.subr.mxu0 0.0
  %177 = vmatpush1.msra.mxu0 0.0
  %178 = vmatprep.subr.mxu0 0.0
  %179 = vmatpush1.msra.mxu0 0.0
  %180 = vmatprep.subr.mxu0 0.0
  %181 = vmatpush1.msra.mxu0 0.0
  %182 = vmatprep.subr.mxu0 0.0
  %183 = vmatpush1.msra.mxu0 0.0
  %184 = vmatprep.subr.mxu0 0.0
  %185 = vmatpush1.msra.mxu0 0.0
  %186 = vmatprep.subr.mxu0 0.0
  %187 = vmatpush1.msra.mxu0 0.0
  %188 = vmatprep.subr.mxu0 0.0
  %189 = vmatpush1.msra.mxu0 0.0
  %190 = vmatprep.subr.mxu0 0.0
  %191 = vmatpush1.msra.mxu0 0.0
  %192 = vmatprep.subr.mxu0 0.0
  %193 = vmatpush1.msra.mxu0 0.0
  %194 = vmatprep.mubr.f32.mxu0 0.0
  %195 = vmatmul.mubr.f32.gmra.mrb[0].mxu0 %v124
  %v196 = vpop.f32.mrb[0].mxu0
  %v197 = vadd.f32 %v120, %v196
  %v198 = vpop.f32.mrb[0].mxu0
  %199 = vdwg.mxu0
  %v200 = vld [vmem:[%s5] sm:$0xf]
  %v203 = vunpack.c.l.s4 1966171168
  %v204 = vunpack.c.0.s8 %v203
  %v205 = vlaneseq
  %v206 = vshrl.u32 %v205, 7
  %v207 = vsub.s32 %v204, %v206
  %v208 = vrot.slane %v197, %v207
  %v209 = vcombine.high %v208, %v208
  %v211 = vunpack.c.l.s4 1966171168
  %v212 = vunpack.c.0.s8 %v211
  %v213 = vlaneseq
  %v214 = vshrl.u32 %v213, 7
  %v215 = vsub.s32 %v212, %v214
  %v216 = vrot.slane %v208, %v215
  %v218 = vunpack.c.l.s4 1966171168
  %v219 = vunpack.c.0.s8 %v218
  %v220 = vlaneseq
  %v221 = vshrl.u32 %v220, 7
  %v222 = vsub.s32 %v219, %v221
  %v223 = vrot.slane %v209, %v222
  %v224 = vlaneseq
  %v225 = vshrl.u32 %v224, 7
  %v226 = vsub.s32 0, %v225
  %v227 = vrot.slane %v216, %v226
  %v228 = vlaneseq
  %v229 = vshrl.u32 %v228, 7
  %v230 = vsub.s32 0, %v229
  %v231 = vrot.slane %v223, %v230
  %v234 = vadd.f32 %v200, %v227
  %v235 = vadd.f32 %v200, %v231
  %236 = vst [vmem:[%s6] sm:$0xff] 0.0
  %237 = vst [vmem:[%s6 + $0x8] sm:$0xff] 0.0
  %238 = vst [vmem:[%s6 + $0x10] sm:$0xff] 0.0
  %239 = vst [vmem:[%s6 + $0x18] sm:$0xff] 0.0
  %240 = vst [vmem:[%s6 + $0x20] sm:$0xff] 0.0
  %241 = vst [vmem:[%s6 + $0x28] sm:$0xff] 0.0
  %242 = vst [vmem:[%s6 + $0x30] sm:$0xff] 0.0
  %243 = vst [vmem:[%s6 + $0x38] sm:$0xff] 0.0
  %244 = vst [vmem:[%s6 + $0x40] sm:$0xff] 0.0
  %245 = vst [vmem:[%s6 + $0x48] sm:$0x1f] 0.0
  %246 = vst [vmem:[%s6 + $0x50] sm:$0xff] 0.0
  %247 = vst [vmem:[%s6 + $0x58] sm:$0xff] 0.0
  %248 = vst [vmem:[%s6 + $0x60] sm:$0xff] 0.0
  %249 = vst [vmem:[%s6 + $0x68] sm:$0xff] 0.0
  %250 = vst [vmem:[%s6 + $0x70] sm:$0xff] 0.0
  %251 = vst [vmem:[%s6 + $0x78] sm:$0xff] 0.0
  %252 = vst [vmem:[%s6 + $0x80] sm:$0xff] 0.0
  %253 = vst [vmem:[%s6 + $0x88] sm:$0xff] 0.0
  %254 = vst [vmem:[%s6 + $0x90] sm:$0xff] 0.0
  %255 = vst [vmem:[%s6 + $0x98] sm:$0x1f] 0.0
  %256 = vst [vmem:[%s6 + $0x1] sm:$0xf] %v234
  %257 = vst [vmem:[%s6 + $0x51] sm:$0xf] %v235
  // Predicated region
  $region26: #{tpu_custom_call.1} parent=0 // pred_check
    _
  $region27: #{tpu_custom_call.1} parent=0 // pred_check_branch
    %259 = sbr.rel (0) target = $region29
  $region28: #{tpu_custom_call.1} parent=0 // pred_region
    _
  $region29: #{tpu_custom_call.1} parent=0 // pred_fallthru
    _
  // Predicated region
  $region30: #{tpu_custom_call.1} parent=0 // pred_check
    _
  $region31: #{tpu_custom_call.1} parent=0 // pred_check_branch
    %261 = sbr.rel (0) target = $region33
  $region32: #{tpu_custom_call.1} parent=0 // pred_region
    _
  $region33: #{tpu_custom_call.1} parent=0 // pred_fallthru
    _

</llo_original>
